<compile_context>
chip_gen: v6e
topology: v6e:2x2x1
jax: 0.10.0
libtpu: 0.0.40
codegen_flags: <defaults>
</compile_context>

<pallas_src>
import functools

import jax
import jax.numpy as jnp
from jax.experimental import pallas as pl
from jax.experimental.pallas import tpu as pltpu


def _round_up(x, m):
    return (x + m - 1) // m * m


def _cdiv(a, b):
    return -(-a // b)


def _vmem_capacity_bytes():
    try:
        cap = int(pltpu.get_tpu_info().vmem_capacity_bytes)
        if cap > 0:
            return cap
    except Exception:
        pass
    return 64 * 1024 * 1024  # conservative fallback (v7x per-TC capacity)


def _num_tensorcores():
    n = 1
    try:
        info = pltpu.get_tpu_info()
        for attr in ("num_cores", "core_count", "num_tensorcores", "tensorcores_per_chip"):
            v = getattr(info, attr, None)
            if isinstance(v, int) and 0 < v <= 8:
                n = max(n, v)
    except Exception:
        pass
    try:
        kind = jax.devices()[0].device_kind.lower()
        if any(s in kind for s in ("v4", "v5p", "v7", "7x")):
            n = max(n, 2)
    except Exception:
        pass
    return n


def _pick_i_tile(I, H, vmem_cap):
    """Intermediate-dim tile: keep the double-buffered weight stream (12*H*I_tile bytes:
    8*H*It fused gate/up bf16 + 4*H*It down bf16) at <= half the VMEM budget."""
    budget = int(0.85 * vmem_cap)
    it_max = max(128, (budget // 2) // (12 * H) // 128 * 128)
    i_aln = _round_up(I, 128)               # 128-aligned so the in-kernel g/u split is lane-aligned
    if i_aln <= it_max:
        return i_aln, 1
    granule = 256 if it_max >= 256 else 128  # 256-aligned tiles match the 2x256^2 MXU (v6e/v7x)
    it_cap = max(granule, it_max // granule * granule)
    n_i = _cdiv(i_aln, it_cap)
    i_tile = _round_up(_cdiv(i_aln, n_i), granule)   # balanced tiling, no cap-sized over-padding
    n_i = _cdiv(i_aln, i_tile)
    return i_tile, n_i


def _pick_t_tile(T, H, i_tile, vmem_cap, n_cores):
    """Token tile: as large as the remaining VMEM budget allows (arithmetic intensity of the
    weight stream ~ T_tile flops/byte), balanced across tiles, >= 2 tiles on multi-core chips."""
    budget = int(0.85 * vmem_cap)
    rem = budget - 12 * H * i_tile - (1 << 20)       # after dbuf'd weight blocks + margin
    per_tok = 12 * H + 14 * i_tile + 1024            # x/out dbuf + f32 gu/h intermediates + rw col
    t_max = max(rem, 0) // per_tok
    t_max = max(8, min(1024, t_max // 8 * 8))
    n_t = max(1, _cdiv(T, t_max))
    if n_cores >= 2 and T >= 256:
        n_t = max(n_t, n_cores)                      # keep both TensorCores busy (v7x / megacore)
    t_tile = _round_up(_cdiv(T, n_t), 8)
    return t_tile, n_t


def _moe_kernel(counts_ref, emap_ref, x_ref, w13_ref, w2_ref, rw_ref, out_ref):
    i = pl.program_id(1)          # intermediate (I) tile index
    e = pl.program_id(2)          # expert index (innermost -> weight-DMA dedup for empty experts)
    i_tile = w2_ref.shape[1]      # static I_tile

    # out_ref block index is invariant in (i, e) -> resident VMEM accumulator for this token tile.
    @pl.when(jnp.logical_and(i == 0, e == 0))
    def _():
        out_ref[...] = jnp.zeros_like(out_ref)

    # Skip all compute for experts with no routed tokens (their weight DMA is elided via emap).
    @pl.when(counts_ref[e] > 0)
    def _():
        x = x_ref[...]                                           # [Tt, H]        bf16
        gu = jnp.dot(x, w13_ref[0],                              # [Tt, 2*It] f32 (single wide MXU op)
                     preferred_element_type=jnp.float32)
        g = gu[:, :i_tile]                                       # lane-aligned static split
        u = gu[:, i_tile:]
        h = (g * jax.nn.sigmoid(g)) * u                          # SiLU gating in f32 (VPU/EUP)
        h = h * rw_ref[0]                                        # routing weight on the narrow side
        out_ref[...] += jnp.dot(h.astype(jnp.bfloat16), w2_ref[0],
                                preferred_element_type=jnp.float32)   # [Tt, H] f32 accumulate


def prepare_moe_weights(w1, w3, w2, *, vmem_capacity_bytes=None):
    """One-time HBM-side weight prep (hoisted out of the per-call path):
       transpose, pad, bf16-cast, and fuse gate/up per I-tile.
       w1/w3: [E, I, H]; w2: [E, H, I] (nn.Linear layout). Returns (w13, w2t, i_tile)."""
    E, I, H = w1.shape
    cap = vmem_capacity_bytes or _vmem_capacity_bytes()
    i_tile, n_i = _pick_i_tile(I, H, cap)
    i_pad = i_tile * n_i

    w1t = jnp.pad(jnp.swapaxes(w1, 1, 2), ((0, 0), (0, 0), (0, i_pad - I)))   # [E, H, I_pad]
    w3t = jnp.pad(jnp.swapaxes(w3, 1, 2), ((0, 0), (0, 0), (0, i_pad - I)))   # [E, H, I_pad]
    # Interleave gate/up per I-tile so one (1, H, 2*I_tile) block feeds a single wide matmul:
    # columns [i*2It : i*2It+It] = w1 tile i, [i*2It+It : (i+1)*2It] = w3 tile i.
    w13 = jnp.concatenate(
        [w1t.reshape(E, H, n_i, 1, i_tile), w3t.reshape(E, H, n_i, 1, i_tile)],
        axis=3).reshape(E, H, n_i * 2 * i_tile).astype(jnp.bfloat16)
    w2t = jnp.pad(jnp.swapaxes(w2, 1, 2),
                  ((0, 0), (0, i_pad - I), (0, 0))).astype(jnp.bfloat16)      # [E, I_pad, H]
    return w13, w2t, i_tile


def gated_mlp_fused_moe(hidden_states, router_logits, w13, w2t, *, top_k, i_tile):
    """hidden_states: [..., H] f32; router_logits: [T, E] f32;
       w13/w2t/i_tile from prepare_moe_weights. Returns [T, H] f32."""
    E, H, last = w13.shape
    n_i = last // (2 * i_tile)
    i_pad = n_i * i_tile

    hidden_states = hidden_states.reshape(-1, H)
    T = hidden_states.shape[0]

    # --- routing glue (plain JAX): softmax then un-renormalized top-k -----------------
    probs = jax.nn.softmax(router_logits.astype(jnp.float32), axis=-1)        # [T, E]
    routing_weights, selected_experts = jax.lax.top_k(probs, top_k)           # [T, K]
    onehot = jax.nn.one_hot(selected_experts, E, dtype=jnp.float32)           # [T, K, E]
    rw_dense = jnp.einsum("tke,tk->et", onehot, routing_weights)              # [E, T]
    counts = jnp.sum(onehot, axis=(0, 1)).astype(jnp.int32)                   # [E]

    # Dedup map: empty experts reuse a neighbouring non-empty expert's resident weight tile
    # (DMA elided); leading empty experts point at the FIRST non-empty expert so even their
    # prefetch is reused rather than wasted.
    idx = jnp.where(counts > 0, jnp.arange(E, dtype=jnp.int32), -1)
    ffill = jax.lax.cummax(idx, axis=0)
    first_ne = jnp.argmax(counts > 0).astype(jnp.int32)
    emap = jnp.where(ffill >= 0, ffill, first_ne).astype(jnp.int32)

    # --- generation-aware token tiling --------------------------------------------------
    cap = _vmem_capacity_bytes()
    n_cores = _num_tensorcores()
    t_tile, n_t = _pick_t_tile(T, H, i_tile, cap, n_cores)
    t_pad = t_tile * n_t

    x_bf = jnp.pad(hidden_states.astype(jnp.float32),
                   ((0, t_pad - T), (0, 0))).astype(jnp.bfloat16)             # [T_pad, H]
    rw_dense = jnp.pad(rw_dense, ((0, 0), (0, t_pad - T))).reshape(E, t_pad, 1)

    # Advisory cost estimate (dense upper bound) so XLA overlaps the routing glue.
    flops = int(6 * t_pad * H * i_pad * E)
    bytes_accessed = int(2 * (x_bf.size + w13.size + w2t.size)
                         + 4 * (t_pad * H + rw_dense.size))
    cost = pl.CostEstimate(flops=flops,
                           transcendentals=int(t_pad * i_pad * E),
                           bytes_accessed=bytes_accessed)

    out = pl.pallas_call(
        _moe_kernel,
        out_shape=jax.ShapeDtypeStruct((t_pad, H), jnp.float32),
        grid_spec=pltpu.PrefetchScalarGridSpec(
            num_scalar_prefetch=2,                 # counts, emap -> SMEM, fed to index_maps
            grid=(n_t, n_i, E),
            in_specs=[
                # x: resident across (i, e) for each token tile.
                pl.BlockSpec((t_tile, H), lambda t, i, e, cnt, em: (t, 0)),
                # fused gate/up weights, data-dependent (deduplicated) expert index.
                pl.BlockSpec((1, H, 2 * i_tile), lambda t, i, e, cnt, em: (em[e], 0, i)),
                # down weights.
                pl.BlockSpec((1, i_tile, H), lambda t, i, e, cnt, em: (em[e], i, 0)),
                # routing-weight column for this (expert, token tile).
                pl.BlockSpec((1, t_tile, 1), lambda t, i, e, cnt, em: (em[e], t, 0)),
            ],
            out_specs=pl.BlockSpec((t_tile, H), lambda t, i, e, cnt, em: (t, 0)),
        ),
        compiler_params=pltpu.CompilerParams(
            # Token tiles shard across TensorCores; (i, e) are reduction axes.
            dimension_semantics=("parallel", "arbitrary", "arbitrary"),
            vmem_limit_bytes=int(0.87 * cap),
        ),
        cost_estimate=cost,
    )(counts, emap, x_bf, w13, w2t, rw_dense)

    return out[:T]


def _reference(hidden_states, router_logits, w1, w3, w2, top_k):
    """Pure-JAX f32 reference mirroring the PyTorch loop semantics (dense form)."""
    probs = jax.nn.softmax(router_logits.astype(jnp.float32), axis=-1)
    routing_weights, selected_experts = jax.lax.top_k(probs, top_k)
    E = w1.shape[0]
    onehot = jax.nn.one_hot(selected_experts, E, dtype=jnp.float32)
    rw_dense = jnp.einsum("tke,tk->et", onehot, routing_weights)              # [E, T]
    out = jnp.zeros_like(hidden_states, dtype=jnp.float32)
    for e in range(E):
        g = hidden_states @ w1[e].T
        u = hidden_states @ w3[e].T
        h = (g * jax.nn.sigmoid(g)) * u
        y = h @ w2[e].T
        out = out + rw_dense[e][:, None] * y
    return out


if __name__ == "__main__":
    # Small, TPU-friendly synthetic config (dtype=None -> float32 in the ref module).
    num_experts = 8
    top_k = 2
    num_tokens = 16
    hidden_size = 128
    intermediate_size = 256

    key = jax.random.PRNGKey(0)
    kx, kl, k1, k3, k2 = jax.random.split(key, 5)

    hidden_states = jax.random.normal(kx, (num_tokens, hidden_size), dtype=jnp.float32)
    router_logits = jax.random.normal(kl, (num_tokens, num_experts), dtype=jnp.float32)

    # Deterministic expert weights (nn.Linear-style shapes, bias=False).
    w1 = jax.random.normal(k1, (num_experts, intermediate_size, hidden_size),
                           dtype=jnp.float32) * 0.05
    w3 = jax.random.normal(k3, (num_experts, intermediate_size, hidden_size),
                           dtype=jnp.float32) * 0.05
    w2 = jax.random.normal(k2, (num_experts, hidden_size, intermediate_size),
                           dtype=jnp.float32) * 0.05

    # One-time weight prep (transpose / pad / bf16 / gate-up fusion) -- not in the per-call path.
    w13, w2t, i_tile = prepare_moe_weights(w1, w3, w2)

    moe = jax.jit(functools.partial(gated_mlp_fused_moe, top_k=top_k, i_tile=i_tile))
    out = moe(hidden_states, router_logits, w13, w2t)
    out = jax.block_until_ready(out)

    ref = _reference(hidden_states, router_logits, w1, w3, w2, top_k)
    assert out.shape == (num_tokens, hidden_size)
    # bf16 matmul operands (f32 accumulation) -> loosened tolerance vs the f32 reference.
    assert jnp.allclose(out, ref, atol=2e-2, rtol=2e-2), "mismatch vs pure-JAX reference"

    print("KERNEL_OK")
</pallas_src>

<mosaic_0001>
module attributes {stable_mosaic.version = 11 : i64} {
  func.func @_moe_kernel(%arg0: i32, %arg1: i32, %arg2: i32, %arg3: memref<8xi32, #tpu.memory_space<smem>>, %arg4: memref<8xi32, #tpu.memory_space<smem>>, %arg5: memref<16x128xbf16, #tpu.memory_space<vmem>>, %arg6: memref<1x128x512xbf16, #tpu.memory_space<vmem>>, %arg7: memref<1x256x128xbf16, #tpu.memory_space<vmem>>, %arg8: memref<1x16x1xf32, #tpu.memory_space<vmem>>, %arg9: memref<16x128xf32, #tpu.memory_space<vmem>>) attributes {dimension_semantics = [#tpu.dimension_semantics<parallel>, #tpu.dimension_semantics<arbitrary>, #tpu.dimension_semantics<arbitrary>], iteration_bounds = array<i64: 1, 1, 8>, scalar_prefetch = 2 : i64, scratch_operands = 0 : i64, tpu.core_type = #tpu.core_type<tc>, window_params = [{transform_indices = @transform_0, window_bounds = array<i64: 16, 128>}, {transform_indices = @transform_1, window_bounds = array<i64: 1, 128, 512>}, {transform_indices = @transform_2, window_bounds = array<i64: 1, 256, 128>}, {transform_indices = @transform_3, window_bounds = array<i64: 1, 16, 1>}, {transform_indices = @transform_4, window_bounds = array<i64: 16, 128>}]} {
    %c0_i32 = arith.constant 0 : i32
    %0 = arith.cmpi eq, %arg1, %c0_i32 : i32
    %c0_i32_0 = arith.constant 0 : i32
    %1 = arith.cmpi eq, %arg2, %c0_i32_0 : i32
    %2 = arith.andi %0, %1 : i1
    %3 = arith.extui %2 : i1 to i32
    %c0_i32_1 = arith.constant 0 : i32
    %4 = arith.cmpi ne, %3, %c0_i32_1 : i32
    scf.if %4 {
      %cst = arith.constant 0.000000e+00 : f32
      %10 = vector.broadcast %cst : f32 to vector<16x128xf32>
      %c0 = arith.constant 0 : index
      %c0_4 = arith.constant 0 : index
      %11 = vector.load %arg9[%c0, %c0_4] : memref<16x128xf32, #tpu.memory_space<vmem>>, vector<16x128xf32>
      tpu.vector_store %arg9[%c0, %c0_4], %10 {strides = array<i32>} : memref<16x128xf32, #tpu.memory_space<vmem>>, vector<16x128xf32>,
    } else {
    }
    %5 = arith.index_cast %arg2 : i32 to index
    %6 = memref.load %arg3[%5] : memref<8xi32, #tpu.memory_space<smem>>
    %c0_i32_2 = arith.constant 0 : i32
    %7 = arith.cmpi sgt, %6, %c0_i32_2 : i32
    %8 = arith.extui %7 : i1 to i32
    %c0_i32_3 = arith.constant 0 : i32
    %9 = arith.cmpi ne, %8, %c0_i32_3 : i32
    scf.if %9 {
      %c0 = arith.constant 0 : index
      %c0_4 = arith.constant 0 : index
      %10 = vector.load %arg5[%c0, %c0_4] : memref<16x128xbf16, #tpu.memory_space<vmem>>, vector<16x128xbf16>
      %c0_5 = arith.constant 0 : index
      %c0_6 = arith.constant 0 : index
      %c0_7 = arith.constant 0 : index
      %11 = vector.load %arg6[%c0_5, %c0_6, %c0_7] : memref<1x128x512xbf16, #tpu.memory_space<vmem>>, vector<1x128x512xbf16>
      %12 = vector.shape_cast %11 : vector<1x128x512xbf16> to vector<128x512xbf16>
      %cst = arith.constant dense<0.000000e+00> : vector<16x512xf32>
      %13 = tpu.matmul %10, %12, %cst {dimension_numbers = #tpu.dot_dimension_numbers<[1], [0], [0], [1], [0, 0, 1, 1], [], []>} : vector<16x128xbf16>, vector<128x512xbf16>, vector<16x512xf32> -> vector<16x512xf32>
      %14 = vector.extract_strided_slice %13 {offsets = [0, 0], sizes = [16, 256], strides = [1, 1]} : vector<16x512xf32> to vector<16x256xf32>
      %15 = vector.extract_strided_slice %13 {offsets = [0, 256], sizes = [16, 256], strides = [1, 1]} : vector<16x512xf32> to vector<16x256xf32>
      %16 = arith.negf %14 : vector<16x256xf32>
      %17 = math.exp %16 : vector<16x256xf32>
      %cst_8 = arith.constant 1.000000e+00 : f32
      %18 = vector.broadcast %cst_8 : f32 to vector<16x256xf32>
      %19 = arith.addf %18, %17 : vector<16x256xf32>
      %20 = arith.divf %18, %19 : vector<16x256xf32>
      %21 = arith.mulf %14, %20 : vector<16x256xf32>
      %22 = arith.mulf %21, %15 : vector<16x256xf32>
      %c0_9 = arith.constant 0 : index
      %c0_10 = arith.constant 0 : index
      %c0_11 = arith.constant 0 : index
      %23 = vector.load %arg8[%c0_9, %c0_10, %c0_11] : memref<1x16x1xf32, #tpu.memory_space<vmem>>, vector<1x16x1xf32>
      %24 = vector.shape_cast %23 : vector<1x16x1xf32> to vector<16x1xf32>
      %25 = vector.broadcast %24 : vector<16x1xf32> to vector<16x256xf32>
      %26 = arith.mulf %22, %25 : vector<16x256xf32>
      %c0_12 = arith.constant 0 : index
      %c0_13 = arith.constant 0 : index
      %27 = vector.load %arg9[%c0_12, %c0_13] : memref<16x128xf32, #tpu.memory_space<vmem>>, vector<16x128xf32>
      %28 = arith.truncf %26 : vector<16x256xf32> to vector<16x256xbf16>
      %c0_14 = arith.constant 0 : index
      %c0_15 = arith.constant 0 : index
      %c0_16 = arith.constant 0 : index
      %29 = vector.load %arg7[%c0_14, %c0_15, %c0_16] : memref<1x256x128xbf16, #tpu.memory_space<vmem>>, vector<1x256x128xbf16>
      %30 = vector.shape_cast %29 : vector<1x256x128xbf16> to vector<256x128xbf16>
      %cst_17 = arith.constant dense<0.000000e+00> : vector<16x128xf32>
      %31 = tpu.matmul %28, %30, %cst_17 {dimension_numbers = #tpu.dot_dimension_numbers<[1], [0], [0], [1], [0, 0, 1, 1], [], []>} : vector<16x256xbf16>, vector<256x128xbf16>, vector<16x128xf32> -> vector<16x128xf32>
      %32 = arith.addf %27, %31 : vector<16x128xf32>
      %c0_18 = arith.constant 0 : index
      %c0_19 = arith.constant 0 : index
      %33 = vector.load %arg9[%c0_18, %c0_19] : memref<16x128xf32, #tpu.memory_space<vmem>>, vector<16x128xf32>
      tpu.vector_store %arg9[%c0_18, %c0_19], %32 {strides = array<i32>} : memref<16x128xf32, #tpu.memory_space<vmem>>, vector<16x128xf32>,
    } else {
    }
    return
  }
  func.func @transform_0(%arg0: i32, %arg1: i32, %arg2: i32, %arg3: memref<8xi32, #tpu.memory_space<smem>>, %arg4: memref<8xi32, #tpu.memory_space<smem>>) -> (i32, i32) {
    %c0_i32 = arith.constant 0 : i32
    %c0_i32_0 = arith.constant 0 : i32
    return %arg0, %c0_i32 : i32, i32
  }
  func.func @transform_1(%arg0: i32, %arg1: i32, %arg2: i32, %arg3: memref<8xi32, #tpu.memory_space<smem>>, %arg4: memref<8xi32, #tpu.memory_space<smem>>) -> (i32, i32, i32) {
    %0 = arith.index_cast %arg2 : i32 to index
    %1 = memref.load %arg4[%0] : memref<8xi32, #tpu.memory_space<smem>>
    %c0_i32 = arith.constant 0 : i32
    %c0_i32_0 = arith.constant 0 : i32
    return %1, %c0_i32, %arg1 : i32, i32, i32
  }
  func.func @transform_2(%arg0: i32, %arg1: i32, %arg2: i32, %arg3: memref<8xi32, #tpu.memory_space<smem>>, %arg4: memref<8xi32, #tpu.memory_space<smem>>) -> (i32, i32, i32) {
    %0 = arith.index_cast %arg2 : i32 to index
    %1 = memref.load %arg4[%0] : memref<8xi32, #tpu.memory_space<smem>>
    %c0_i32 = arith.constant 0 : i32
    %c0_i32_0 = arith.constant 0 : i32
    return %1, %arg1, %c0_i32 : i32, i32, i32
  }
  func.func @transform_3(%arg0: i32, %arg1: i32, %arg2: i32, %arg3: memref<8xi32, #tpu.memory_space<smem>>, %arg4: memref<8xi32, #tpu.memory_space<smem>>) -> (i32, i32, i32) {
    %0 = arith.index_cast %arg2 : i32 to index
    %1 = memref.load %arg4[%0] : memref<8xi32, #tpu.memory_space<smem>>
    %c0_i32 = arith.constant 0 : i32
    %c0_i32_0 = arith.constant 0 : i32
    return %1, %arg0, %c0_i32 : i32, i32, i32
  }
  func.func @transform_4(%arg0: i32, %arg1: i32, %arg2: i32, %arg3: memref<8xi32, #tpu.memory_space<smem>>, %arg4: memref<8xi32, #tpu.memory_space<smem>>) -> (i32, i32) {
    %c0_i32 = arith.constant 0 : i32
    %c0_i32_0 = arith.constant 0 : i32
    return %arg0, %c0_i32 : i32, i32
  }
}

</mosaic_0001>

<llo_original>
// kernel: gated_mlp_fused_moe.1
$region0: #{gated_mlp_fused_moe.1}
  #allocation0 [shape = 'u32[]', space=smem, size = 0x4, offset = 0x4, fixed_abs, tag = 'smem constant byte address 0x4 - core index']
  #allocation1 [shape = 'u32[144,128]{1,0:T(1,128)}', space=vmem, size = 0x12000, scoped, tag = 'internal scratch']
  #allocation2 [shape = 's32[1]{0}', space=sflag, size = 0x4, scoped, tag = 'scoped memory for gated_mlp_fused_moe.1']
  #allocation3 [shape = 'u8[512]{0}', space=smem, size = 0x200, scoped, tag = 'prefetched SMEM operand 0']
  #allocation4 [shape = 'u8[512]{0}', space=smem, size = 0x200, scoped, tag = 'prefetched SMEM operand 1']
  %s0 = inlined_call_operand.vmem [shape: s32[8], index: 0, kind: input, shape index: {}]
  %s1 = inlined_call_operand.vmem [shape: s32[8], index: 1, kind: input, shape index: {}]
  %s2 = inlined_call_operand.vmem [shape: bf16[16,128], index: 2, kind: input, shape index: {}]
  %s3 = inlined_call_operand.hbm [shape: bf16[8,128,512], index: 3, kind: input, shape index: {}]
  %s4 = inlined_call_operand.hbm [shape: bf16[8,256,128], index: 4, kind: input, shape index: {}]
  %s5 = inlined_call_operand.vmem [shape: f32[8,16,1], index: 5, kind: input, shape index: {}]
  %s6 = inlined_call_operand.hbm [shape: f32[16,128], index: 6, kind: output, shape index: {}]
  %s7 = sld [smem:[#allocation0]]
  $region65: #{gated_mlp_fused_moe.1} parent=0
    _
  %s9 = ssub.s32 1, %s7
  %s10 = scalar_select 0, %s9, %s7
  %s11 = sshll.u32 %s0, 4
  %s12 = int_to_ptr.vmem [resolvable:$true] %s11
  %14 = dma.vmem_to_smem %s12, 16, [#allocation3], [#allocation2]
  %s15 = sshll.u32 %s1, 4
  %s16 = int_to_ptr.vmem [resolvable:$true] %s15
  %18 = dma.vmem_to_smem %s16, 16, [#allocation4], [#allocation2]
  %19 = dma.done [#allocation2], 32
  %20 = sfence
  $region1: #{gated_mlp_fused_moe.1} parent=0
    #allocation5 [shape = 'u8[262144]{0}', space=vmem, size = 0x40000, scoped, tag = 'input window, operand 3']
    #allocation6 [shape = 's32[2]{0}', space=sflag, size = 0x8, scoped, tag = 'scoped memory for gated_mlp_fused_moe.1']
    #allocation7 [shape = 's32[2]{0}', space=sflag, size = 0x8, scoped, tag = 'scoped memory for gated_mlp_fused_moe.1']
    #allocation8 [shape = 'u8[131072]{0}', space=vmem, size = 0x20000, scoped, tag = 'input window, operand 4']
    #allocation9 [shape = 's32[2]{0}', space=sflag, size = 0x8, scoped, tag = 'scoped memory for gated_mlp_fused_moe.1']
    #allocation10 [shape = 'u8[8192]{0}', space=vmem, size = 0x2000, scoped, tag = 'output window, operand 0, single buffered']
    %21 = vsyncpa [#allocation6], 0
    %s22 = scalar_lea.sflag [#allocation6], 1
    %23 = vsyncpa %s22, 0
    %24 = vsyncpa [#allocation9], 0
    %s25 = scalar_lea.sflag [#allocation9], 1
    %26 = vsyncpa %s25, 0
    %27 = vsyncpa [#allocation7], 0
    loop: start=0, step=1, limit=10
    $region2: #{gated_mlp_fused_moe.1} parent=1 // loop_pre_header
      _
    $region3: #{gated_mlp_fused_moe.1} parent=1 // loop_header
      %s29 = sphi 0, %s33
      %p30 = scmp.ge.s32.totalorder %s29, 10
      %s36 = sphi 0, %s55
      %s37 = sphi 0, %s51
      %s38 = sphi 0, %s47
      %s39 = sphi 0, %s36
      %s40 = sphi 0, %s37
      %s41 = sphi 0, %s38
      %s42 = sphi 0, %s39
      %s43 = sphi 0, %s40
      %s44 = sphi 0, %s41
      %s58 = sphi 0, %s60
      %s61 = sphi 0, %s58
      %s62 = sphi 0, %s61
      %s78 = sphi 0, %s62
      %s88 = sphi 0, %s90
      %s91 = sphi 0, %s88
      %s92 = sphi 0, %s91
      %s108 = sphi 0, %s92
      %s118 = sphi 0, %s120
      %s121 = sphi 0, %s118
      %s122 = sphi 0, %s121
      %s138 = sphi 0, %s122
      %s148 = sphi 0, %s150
      %s151 = sphi 0, %s148
      %s152 = sphi 0, %s151
      %s168 = sphi 0, %s152
      %s174 = sphi 0, %s176
      %s177 = sphi 0, %s174
      %s178 = sphi 0, %s177
      %s194 = sphi 0, %s178
    $region4: #{gated_mlp_fused_moe.1} parent=1 // loop_header_branch
      %32 = sbr.rel (%p30) target = $region8
    $region5: #{gated_mlp_fused_moe.1} parent=1 // loop_body
      %s34 = ssub.s32 %s29, 1
      %s35 = ssub.s32 %s29, 2
      %s45 = sadd.s32 1, %s38
      %p46 = scmp.ge.s32.totalorder %s45, 8
      %s47 = scalar_select %p46, 0, %s45
      %s48 = sadd.s32 1, %s37
      %s49 = scalar_select %p46, %s48, %s37
      %p50 = scmp.ge.s32.totalorder %s49, 1
      %s51 = scalar_select %p50, 0, %s49
      %s52 = sadd.s32 1, %s36
      %s53 = scalar_select %p50, %s52, %s36
      %p54 = scmp.ge.s32.totalorder %s53, 1
      %s55 = scalar_select %p54, 0, %s53
      %s56 = ssub.s32 %s36, %s55
      %p57 = scmp.eq.s32.totalorder %s56, 0
      %s59 = sadd.s32 %s58, 1
      %s60 = scalar_select %p57, %s58, %s59
      %p63 = pneg %p57
      %p64 = scmp.eq.s32.totalorder %s29, 7
      %p65 = por %p63, %p64
      %p66 = scmp.ne.s32.totalorder %s58, %s61
      %p67 = scmp.eq.s32.totalorder %s29, 0
      %p68 = por %p66, %p67
      %p69 = scmp.ne.s32.totalorder %s58, %s61
      %p70 = scmp.eq.s32.totalorder %s34, 7
      %p71 = por %p69, %p70
      %p72 = scmp.ne.s32.totalorder %s61, %s62
      %p73 = scmp.eq.s32.totalorder %s34, 0
      %p74 = por %p72, %p73
      %p75 = scmp.ne.s32.totalorder %s61, %s62
      %p76 = scmp.eq.s32.totalorder %s35, 7
      %p77 = por %p75, %p76
      %p79 = scmp.ne.s32.totalorder %s62, %s78
      %p80 = scmp.eq.s32.totalorder %s35, 0
      %p81 = por %p79, %p80
      %s82 = sld [smem:[#allocation4 + %s38]]
      %s83 = sld [smem:[#allocation4 + %s47]]
      %s84 = ssub.s32 %s82, %s83
      %s85 = ssub.s32 %s37, %s51
      %s86 = sor.u32 %s84, %s85
      %p87 = scmp.eq.s32.totalorder %s86, 0
      %s89 = sadd.s32 %s88, 1
      %s90 = scalar_select %p87, %s88, %s89
      %p93 = pneg %p87
      %p94 = scmp.eq.s32.totalorder %s29, 7
      %p95 = por %p93, %p94
      %p96 = scmp.ne.s32.totalorder %s88, %s91
      %p97 = scmp.eq.s32.totalorder %s29, 0
      %p98 = por %p96, %p97
      %p99 = scmp.ne.s32.totalorder %s88, %s91
      %p100 = scmp.eq.s32.totalorder %s34, 7
      %p101 = por %p99, %p100
      %p102 = scmp.ne.s32.totalorder %s91, %s92
      %p103 = scmp.eq.s32.totalorder %s34, 0
      %p104 = por %p102, %p103
      %p105 = scmp.ne.s32.totalorder %s91, %s92
      %p106 = scmp.eq.s32.totalorder %s35, 7
      %p107 = por %p105, %p106
      %p109 = scmp.ne.s32.totalorder %s92, %s108
      %p110 = scmp.eq.s32.totalorder %s35, 0
      %p111 = por %p109, %p110
      %s112 = sld [smem:[#allocation4 + %s38]]
      %s113 = sld [smem:[#allocation4 + %s47]]
      %s114 = ssub.s32 %s112, %s113
      %s115 = ssub.s32 %s37, %s51
      %s116 = sor.u32 %s114, %s115
      %p117 = scmp.eq.s32.totalorder %s116, 0
      %s119 = sadd.s32 %s118, 1
      %s120 = scalar_select %p117, %s118, %s119
      %p123 = pneg %p117
      %p124 = scmp.eq.s32.totalorder %s29, 7
      %p125 = por %p123, %p124
      %p126 = scmp.ne.s32.totalorder %s118, %s121
      %p127 = scmp.eq.s32.totalorder %s29, 0
      %p128 = por %p126, %p127
      %p129 = scmp.ne.s32.totalorder %s118, %s121
      %p130 = scmp.eq.s32.totalorder %s34, 7
      %p131 = por %p129, %p130
      %p132 = scmp.ne.s32.totalorder %s121, %s122
      %p133 = scmp.eq.s32.totalorder %s34, 0
      %p134 = por %p132, %p133
      %p135 = scmp.ne.s32.totalorder %s121, %s122
      %p136 = scmp.eq.s32.totalorder %s35, 7
      %p137 = por %p135, %p136
      %p139 = scmp.ne.s32.totalorder %s122, %s138
      %p140 = scmp.eq.s32.totalorder %s35, 0
      %p141 = por %p139, %p140
      %s142 = sld [smem:[#allocation4 + %s38]]
      %s143 = sld [smem:[#allocation4 + %s47]]
      %s144 = ssub.s32 %s142, %s143
      %s145 = ssub.s32 %s36, %s55
      %s146 = sor.u32 %s144, %s145
      %p147 = scmp.eq.s32.totalorder %s146, 0
      %s149 = sadd.s32 %s148, 1
      %s150 = scalar_select %p147, %s148, %s149
      %p153 = pneg %p147
      %p154 = scmp.eq.s32.totalorder %s29, 7
      %p155 = por %p153, %p154
      %p156 = scmp.ne.s32.totalorder %s148, %s151
      %p157 = scmp.eq.s32.totalorder %s29, 0
      %p158 = por %p156, %p157
      %p159 = scmp.ne.s32.totalorder %s148, %s151
      %p160 = scmp.eq.s32.totalorder %s34, 7
      %p161 = por %p159, %p160
      %p162 = scmp.ne.s32.totalorder %s151, %s152
      %p163 = scmp.eq.s32.totalorder %s34, 0
      %p164 = por %p162, %p163
      %p165 = scmp.ne.s32.totalorder %s151, %s152
      %p166 = scmp.eq.s32.totalorder %s35, 7
      %p167 = por %p165, %p166
      %p169 = scmp.ne.s32.totalorder %s152, %s168
      %p170 = scmp.eq.s32.totalorder %s35, 0
      %p171 = por %p169, %p170
      %s172 = ssub.s32 %s36, %s55
      %p173 = scmp.eq.s32.totalorder %s172, 0
      %s175 = sadd.s32 %s174, 1
      %s176 = scalar_select %p173, %s174, %s175
      %p179 = pneg %p173
      %p180 = scmp.eq.s32.totalorder %s29, 7
      %p181 = por %p179, %p180
      %p182 = scmp.ne.s32.totalorder %s174, %s177
      %p183 = scmp.eq.s32.totalorder %s29, 0
      %p184 = por %p182, %p183
      %p185 = scmp.ne.s32.totalorder %s174, %s177
      %p186 = scmp.eq.s32.totalorder %s34, 7
      %p187 = por %p185, %p186
      %p188 = scmp.ne.s32.totalorder %s177, %s178
      %p189 = scmp.eq.s32.totalorder %s34, 0
      %p190 = por %p188, %p189
      %p191 = scmp.ne.s32.totalorder %s177, %s178
      %p192 = scmp.eq.s32.totalorder %s35, 7
      %p193 = por %p191, %p192
      %p195 = scmp.ne.s32.totalorder %s178, %s194
      %p196 = scmp.eq.s32.totalorder %s35, 0
      %p197 = por %p195, %p196
      %p198 = scmp.le.s32.totalorder 1, %s29
      %p199 = scmp.lt.s32.totalorder %s29, 9
      %p200 = pnand %p198, %p199
      %p201 = pneg %p200
      // Predicated region
      $region9: #{gated_mlp_fused_moe.1} parent=5 // pred_check
        _
      $region10: #{gated_mlp_fused_moe.1} parent=5 // pred_check_branch
        %203 = sbr.rel (%p200) target = $region12
      $region11: #{gated_mlp_fused_moe.1} parent=5 // pred_region
        %s204 = ssub.s32 %s29, 1
        // Predicated region
        $region13: #{gated_mlp_fused_moe.1} parent=11 // pred_check
          %p205 = pneg %p74
        $region14: #{gated_mlp_fused_moe.1} parent=11 // pred_check_branch
          %207 = sbr.rel (%p205) target = $region16
        $region15: #{gated_mlp_fused_moe.1} parent=11 // pred_region
          %s208 = smul.u32 2, %s39
          %p209 = scmp.lt.s32.totalorder %s208, 1
          %s210 = scalar_select %p209, %s208, 1
          %s211 = smul.addr %s210, 4
          %s212 = scalar_lea.vmem %s2, %s211
          %s213 = smul.u32 2, %s39
        $region16: #{gated_mlp_fused_moe.1} parent=11 // pred_fallthru
          _
      $region12: #{gated_mlp_fused_moe.1} parent=5 // pred_fallthru
        _
      %p214 = scmp.lt.s32.totalorder %s29, 8
      // Predicated region
      $region17: #{gated_mlp_fused_moe.1} parent=5 // pred_check
        %p215 = pneg %p214
      $region18: #{gated_mlp_fused_moe.1} parent=5 // pred_check_branch
        %217 = sbr.rel (%p215) target = $region20
      $region19: #{gated_mlp_fused_moe.1} parent=5 // pred_region
        // Predicated region
        $region21: #{gated_mlp_fused_moe.1} parent=19 // pred_check
          %p218 = pneg %p98
        $region22: #{gated_mlp_fused_moe.1} parent=19 // pred_check_branch
          %220 = sbr.rel (%p218) target = $region24
        $region23: #{gated_mlp_fused_moe.1} parent=19 // pred_region
          %s221 = sand.u32 %s88, 1
          %s222 = scalar_lea.sflag [#allocation6], %s221
          %s223 = sand.u32 %s88, 1
          %s224 = smul.addr %s223, 256
          %s225 = scalar_lea.vmem [#allocation5], %s224
          %s226 = sld [smem:[#allocation4 + %s38]]
          %s227 = smul.u32 4, %s37
          %s229 = ssub.s32 4096, 4096
          %230 = vsyncadd %s222, %s229
          %s231 = smul.addr %s226, 64
          %s232 = sadd.s32 %s227, %s231
          %s233 = smul.addr %s232, 64
          %s234 = scalar_lea.hbm %s3, %s233
          %s235 = sshll.u32 %s225, 4
          %s236 = int_to_ptr.vmem [resolvable:$true] %s235
          %241 = dma.hbm_to_vmem [thread:$0]  %s234, 4096, %s236, %s222, 256, 256, 16
        $region24: #{gated_mlp_fused_moe.1} parent=19 // pred_fallthru
          _
        // Predicated region
        $region25: #{gated_mlp_fused_moe.1} parent=19 // pred_check
          %p242 = pneg %p128
        $region26: #{gated_mlp_fused_moe.1} parent=19 // pred_check_branch
          %244 = sbr.rel (%p242) target = $region28
        $region27: #{gated_mlp_fused_moe.1} parent=19 // pred_region
          %s245 = sand.u32 %s118, 1
          %s246 = scalar_lea.sflag [#allocation9], %s245
          %s247 = sand.u32 %s118, 1
          %s248 = smul.addr %s247, 128
          %s249 = scalar_lea.vmem [#allocation8], %s248
          %s250 = sld [smem:[#allocation4 + %s38]]
          %s251 = smul.u32 32, %s37
          %s253 = ssub.s32 2048, 2048
          %254 = vsyncadd %s246, %s253
          %s255 = smul.addr %s250, 32
          %s256 = sadd.s32 %s251, %s255
          %s257 = smul.addr %s256, 64
          %s258 = scalar_lea.hbm %s4, %s257
          %s259 = sshll.u32 %s249, 4
          %s260 = int_to_ptr.vmem [resolvable:$true] %s259
          %265 = dma.hbm_to_vmem [thread:$0]  %s258, 2048, %s260, %s246, 64, 64, 4
        $region28: #{gated_mlp_fused_moe.1} parent=19 // pred_fallthru
          _
        // Predicated region
        $region29: #{gated_mlp_fused_moe.1} parent=19 // pred_check
          %p266 = pneg %p158
        $region30: #{gated_mlp_fused_moe.1} parent=19 // pred_check_branch
          %268 = sbr.rel (%p266) target = $region32
        $region31: #{gated_mlp_fused_moe.1} parent=19 // pred_region
          %s269 = sld [smem:[#allocation4 + %s38]]
          %s270 = smul.u32 2, %s36
          %p271 = scmp.lt.s32.totalorder %s269, 7
          %s272 = scalar_select %p271, %s269, 7
          %p273 = scmp.lt.s32.totalorder %s270, 1
          %s274 = scalar_select %p273, %s270, 1
          %s275 = smul.addr %s272, 2
          %s276 = sadd.s32 %s274, %s275
          %s277 = smul.addr %s276, 8
          %s278 = scalar_lea.vmem %s5, %s277
          %s279 = sld [smem:[#allocation4 + %s38]]
          %s280 = smul.u32 2, %s36
        $region32: #{gated_mlp_fused_moe.1} parent=19 // pred_fallthru
          _
      $region20: #{gated_mlp_fused_moe.1} parent=5 // pred_fallthru
        _
      %p281 = scmp.le.s32.totalorder 1, %s29
      %p282 = scmp.lt.s32.totalorder %s29, 9
      %p283 = pnand %p281, %p282
      %p284 = pneg %p283
      // Predicated region
      $region33: #{gated_mlp_fused_moe.1} parent=5 // pred_check
        _
      $region34: #{gated_mlp_fused_moe.1} parent=5 // pred_check_branch
        %286 = sbr.rel (%p283) target = $region36
      $region35: #{gated_mlp_fused_moe.1} parent=5 // pred_region
        %s287 = ssub.s32 %s29, 1
        %s288 = sand.u32 %s91, 1
        %s289 = scalar_lea.sflag [#allocation6], %s288
        %s290 = sand.u32 %s91, 1
        %s291 = smul.addr %s290, 256
        %s292 = scalar_lea.vmem [#allocation5], %s291
        // Predicated region
        $region37: #{gated_mlp_fused_moe.1} parent=35 // pred_check
          %p293 = pneg %p104
        $region38: #{gated_mlp_fused_moe.1} parent=35 // pred_check_branch
          %295 = sbr.rel (%p293) target = $region40
        $region39: #{gated_mlp_fused_moe.1} parent=35 // pred_region
          %296 = dma.done %s289, 4096
        $region40: #{gated_mlp_fused_moe.1} parent=35 // pred_fallthru
          _
        %s297 = sand.u32 %s121, 1
        %s298 = scalar_lea.sflag [#allocation9], %s297
        %s299 = sand.u32 %s121, 1
        %s300 = smul.addr %s299, 128
        %s301 = scalar_lea.vmem [#allocation8], %s300
        // Predicated region
        $region41: #{gated_mlp_fused_moe.1} parent=35 // pred_check
          %p302 = pneg %p134
        $region42: #{gated_mlp_fused_moe.1} parent=35 // pred_check_branch
          %304 = sbr.rel (%p302) target = $region44
        $region43: #{gated_mlp_fused_moe.1} parent=35 // pred_region
          %305 = dma.done %s298, 2048
        $region44: #{gated_mlp_fused_moe.1} parent=35 // pred_fallthru
          _
        %s306 = smul.u32 2, %s39
        %p307 = scmp.lt.s32.totalorder %s306, 1
        %s308 = scalar_select %p307, %s306, 1
        %s309 = smul.addr %s308, 4
        %s310 = scalar_lea.vmem %s2, %s309
        %p311 = pneg %p74
        %p312 = pneg %p71
        %s313 = sand.u32 %s91, 1
        %s314 = scalar_lea.sflag [#allocation6], %s313
        %s315 = sand.u32 %s91, 1
        %s316 = smul.addr %s315, 256
        %s317 = scalar_lea.vmem [#allocation5], %s316
        %p318 = pneg %p104
        %p319 = pneg %p101
        %s320 = sand.u32 %s121, 1
        %s321 = scalar_lea.sflag [#allocation9], %s320
        %s322 = sand.u32 %s121, 1
        %s323 = smul.addr %s322, 128
        %s324 = scalar_lea.vmem [#allocation8], %s323
        %p325 = pneg %p134
        %p326 = pneg %p131
        %s327 = sld [smem:[#allocation4 + %s41]]
        %s328 = smul.u32 2, %s39
        %p329 = scmp.lt.s32.totalorder %s327, 7
        %s330 = scalar_select %p329, %s327, 7
        %p331 = scmp.lt.s32.totalorder %s328, 1
        %s332 = scalar_select %p331, %s328, 1
        %s333 = smul.addr %s330, 2
        %s334 = sadd.s32 %s332, %s333
        %s335 = smul.addr %s334, 8
        %s336 = scalar_lea.vmem %s5, %s335
        %p337 = pneg %p164
        %p338 = pneg %p161
        %p339 = pneg %p190
        %p340 = pneg %p187
        %s341 = smul.u32 2, %s39
        %p342 = scmp.lt.s32.totalorder %s341, 1
        %s343 = scalar_select %p342, %s341, 1
        %s344 = smul.addr %s343, 4
        %s345 = scalar_lea.vmem %s2, %s344
        %s346 = smul.u32 2, %s39
        %s347 = sld [smem:[#allocation4 + %s41]]
        %s348 = smul.u32 4, %s40
        %s349 = sld [smem:[#allocation4 + %s41]]
        %s350 = smul.u32 32, %s40
        %s351 = sld [smem:[#allocation4 + %s41]]
        %s352 = smul.u32 2, %s39
        %p353 = scmp.lt.s32.totalorder %s351, 7
        %s354 = scalar_select %p353, %s351, 7
        %p355 = scmp.lt.s32.totalorder %s352, 1
        %s356 = scalar_select %p355, %s352, 1
        %s357 = smul.addr %s354, 2
        %s358 = sadd.s32 %s356, %s357
        %s359 = smul.addr %s358, 8
        %s360 = scalar_lea.vmem %s5, %s359
        %s361 = sld [smem:[#allocation4 + %s41]]
        %s362 = smul.u32 2, %s39
        %s363 = smul.u32 2, %s39
        %p365 = scmp.eq.s32.totalorder %s40, 0
        %p366 = scmp.eq.s32.totalorder %s41, 0
        %p367 = pnand %p365, %p366
        %p368 = pneg %p367
        // Predicated region
        $region45: #{gated_mlp_fused_moe.1} parent=35 // pred_check
          _
        $region46: #{gated_mlp_fused_moe.1} parent=35 // pred_check_branch
          %370 = sbr.rel (%p367) target = $region48
        $region47: #{gated_mlp_fused_moe.1} parent=35 // pred_region
          %371 = vst [vmem:[#allocation10] sm:$0xff] 0.0
          %372 = vst [vmem:[#allocation10 + $0x8] sm:$0xff] 0.0
        $region48: #{gated_mlp_fused_moe.1} parent=35 // pred_fallthru
          _
        %s373 = sld [smem:[#allocation3 + %s41]]
        %p374 = scmp.gt.s32.totalorder %s373, 0
        // Predicated region
        $region49: #{gated_mlp_fused_moe.1} parent=35 // pred_check
          %p375 = pneg %p374
        $region50: #{gated_mlp_fused_moe.1} parent=35 // pred_check_branch
          %377 = sbr.rel (%p375) target = $region52
        $region51: #{gated_mlp_fused_moe.1} parent=35 // pred_region
          %v378 = vld [vmem:[%s345] sm:$0xf]
          %v379 = vld [vmem:[%s345 + $0x4] sm:$0xf]
          %v380 = vld [vmem:[%s292] sm:$0xff]
          %v381 = vld [vmem:[%s292 + $0x8] sm:$0xff]
          %v382 = vld [vmem:[%s292 + $0x10] sm:$0xff]
          %v383 = vld [vmem:[%s292 + $0x18] sm:$0xff]
          %v384 = vld [vmem:[%s292 + $0x20] sm:$0xff]
          %v385 = vld [vmem:[%s292 + $0x28] sm:$0xff]
          %v386 = vld [vmem:[%s292 + $0x30] sm:$0xff]
          %v387 = vld [vmem:[%s292 + $0x38] sm:$0xff]
          %v388 = vld [vmem:[%s292 + $0x40] sm:$0xff]
          %v389 = vld [vmem:[%s292 + $0x48] sm:$0xff]
          %v390 = vld [vmem:[%s292 + $0x50] sm:$0xff]
          %v391 = vld [vmem:[%s292 + $0x58] sm:$0xff]
          %v392 = vld [vmem:[%s292 + $0x60] sm:$0xff]
          %v393 = vld [vmem:[%s292 + $0x68] sm:$0xff]
          %v394 = vld [vmem:[%s292 + $0x70] sm:$0xff]
          %v395 = vld [vmem:[%s292 + $0x78] sm:$0xff]
          %v396 = vld [vmem:[%s292 + $0x80] sm:$0xff]
          %v397 = vld [vmem:[%s292 + $0x88] sm:$0xff]
          %v398 = vld [vmem:[%s292 + $0x90] sm:$0xff]
          %v399 = vld [vmem:[%s292 + $0x98] sm:$0xff]
          %v400 = vld [vmem:[%s292 + $0xa0] sm:$0xff]
          %v401 = vld [vmem:[%s292 + $0xa8] sm:$0xff]
          %v402 = vld [vmem:[%s292 + $0xb0] sm:$0xff]
          %v403 = vld [vmem:[%s292 + $0xb8] sm:$0xff]
          %v404 = vld [vmem:[%s292 + $0xc0] sm:$0xff]
          %v405 = vld [vmem:[%s292 + $0xc8] sm:$0xff]
          %v406 = vld [vmem:[%s292 + $0xd0] sm:$0xff]
          %v407 = vld [vmem:[%s292 + $0xd8] sm:$0xff]
          %v408 = vld [vmem:[%s292 + $0xe0] sm:$0xff]
          %v409 = vld [vmem:[%s292 + $0xe8] sm:$0xff]
          %v410 = vld [vmem:[%s292 + $0xf0] sm:$0xff]
          %v411 = vld [vmem:[%s292 + $0xf8] sm:$0xff]
          %v414 = vunpack.c.l.b16 %v378
          %v415 = vunpack.c.l.b16 %v379
          %v416 = vpack.c.b16 %v415, %v414
          %v450 = vunpack.c.l.b16 %v380
          %v451 = vunpack.c.h.b16 %v380
          %v452 = vunpack.c.l.b16 %v381
          %v453 = vunpack.c.h.b16 %v381
          %v454 = vunpack.c.l.b16 %v382
          %v455 = vunpack.c.h.b16 %v382
          %v456 = vunpack.c.l.b16 %v383
          %v457 = vunpack.c.h.b16 %v383
          %v458 = vunpack.c.l.b16 %v384
          %v459 = vunpack.c.h.b16 %v384
          %v460 = vunpack.c.l.b16 %v385
          %v461 = vunpack.c.h.b16 %v385
          %v462 = vunpack.c.l.b16 %v386
          %v463 = vunpack.c.h.b16 %v386
          %v464 = vunpack.c.l.b16 %v387
          %v465 = vunpack.c.h.b16 %v387
          %v466 = vunpack.c.l.b16 %v388
          %v467 = vunpack.c.h.b16 %v388
          %v468 = vunpack.c.l.b16 %v389
          %v469 = vunpack.c.h.b16 %v389
          %v470 = vunpack.c.l.b16 %v390
          %v471 = vunpack.c.h.b16 %v390
          %v472 = vunpack.c.l.b16 %v391
          %v473 = vunpack.c.h.b16 %v391
          %v474 = vunpack.c.l.b16 %v392
          %v475 = vunpack.c.h.b16 %v392
          %v476 = vunpack.c.l.b16 %v393
          %v477 = vunpack.c.h.b16 %v393
          %v478 = vunpack.c.l.b16 %v394
          %v479 = vunpack.c.h.b16 %v394
          %v480 = vunpack.c.l.b16 %v395
          %v481 = vunpack.c.h.b16 %v395
          %v482 = vunpack.c.l.b16 %v396
          %v483 = vunpack.c.h.b16 %v396
          %v484 = vunpack.c.l.b16 %v397
          %v485 = vunpack.c.h.b16 %v397
          %v486 = vunpack.c.l.b16 %v398
          %v487 = vunpack.c.h.b16 %v398
          %v488 = vunpack.c.l.b16 %v399
          %v489 = vunpack.c.h.b16 %v399
          %v490 = vunpack.c.l.b16 %v400
          %v491 = vunpack.c.h.b16 %v400
          %v492 = vunpack.c.l.b16 %v401
          %v493 = vunpack.c.h.b16 %v401
          %v494 = vunpack.c.l.b16 %v402
          %v495 = vunpack.c.h.b16 %v402
          %v496 = vunpack.c.l.b16 %v403
          %v497 = vunpack.c.h.b16 %v403
          %v498 = vunpack.c.l.b16 %v404
          %v499 = vunpack.c.h.b16 %v404
          %v500 = vunpack.c.l.b16 %v405
          %v501 = vunpack.c.h.b16 %v405
          %v502 = vunpack.c.l.b16 %v406
          %v503 = vunpack.c.h.b16 %v406
          %v504 = vunpack.c.l.b16 %v407
          %v505 = vunpack.c.h.b16 %v407
          %v506 = vunpack.c.l.b16 %v408
          %v507 = vunpack.c.h.b16 %v408
          %v508 = vunpack.c.l.b16 %v409
          %v509 = vunpack.c.h.b16 %v409
          %v510 = vunpack.c.l.b16 %v410
          %v511 = vunpack.c.h.b16 %v410
          %v512 = vunpack.c.l.b16 %v411
          %v513 = vunpack.c.h.b16 %v411
          %v514 = vpack.c.b16 %v454, %v450
          %v515 = vpack.c.b16 %v455, %v451
          %v516 = vpack.c.b16 %v456, %v452
          %v517 = vpack.c.b16 %v457, %v453
          %v518 = vpack.c.b16 %v462, %v458
          %v519 = vpack.c.b16 %v463, %v459
          %v520 = vpack.c.b16 %v464, %v460
          %v521 = vpack.c.b16 %v465, %v461
          %v522 = vpack.c.b16 %v470, %v466
          %v523 = vpack.c.b16 %v471, %v467
          %v524 = vpack.c.b16 %v472, %v468
          %v525 = vpack.c.b16 %v473, %v469
          %v526 = vpack.c.b16 %v478, %v474
          %v527 = vpack.c.b16 %v479, %v475
          %v528 = vpack.c.b16 %v480, %v476
          %v529 = vpack.c.b16 %v481, %v477
          %v530 = vpack.c.b16 %v486, %v482
          %v531 = vpack.c.b16 %v487, %v483
          %v532 = vpack.c.b16 %v488, %v484
          %v533 = vpack.c.b16 %v489, %v485
          %v534 = vpack.c.b16 %v494, %v490
          %v535 = vpack.c.b16 %v495, %v491
          %v536 = vpack.c.b16 %v496, %v492
          %v537 = vpack.c.b16 %v497, %v493
          %v538 = vpack.c.b16 %v502, %v498
          %v539 = vpack.c.b16 %v503, %v499
          %v540 = vpack.c.b16 %v504, %v500
          %v541 = vpack.c.b16 %v505, %v501
          %v542 = vpack.c.b16 %v510, %v506
          %v543 = vpack.c.b16 %v511, %v507
          %v544 = vpack.c.b16 %v512, %v508
          %v545 = vpack.c.b16 %v513, %v509
          %578 = vmatprep.subr.bf16.mxu0 %v543
          %579 = vmatpush1.bf16.msra.mxu0 %v542
          %580 = vmatprep.subr.bf16.mxu0 %v539
          %581 = vmatpush1.bf16.msra.mxu0 %v538
          %582 = vmatprep.subr.bf16.mxu0 %v535
          %583 = vmatpush1.bf16.msra.mxu0 %v534
          %584 = vmatprep.subr.bf16.mxu0 %v531
          %585 = vmatpush1.bf16.msra.mxu0 %v530
          %586 = vmatprep.subr.bf16.mxu0 %v527
          %587 = vmatpush1.bf16.msra.mxu0 %v526
          %588 = vmatprep.subr.bf16.mxu0 %v523
          %589 = vmatpush1.bf16.msra.mxu0 %v522
          %590 = vmatprep.subr.bf16.mxu0 %v519
          %591 = vmatpush1.bf16.msra.mxu0 %v518
          %592 = vmatprep.subr.bf16.mxu0 %v515
          %593 = vmatpush1.bf16.msra.mxu0 %v514
          %594 = vmatprep.subr.bf16.mxu0 0
          %595 = vmatpush2.bf16.msra.mxu0 0
          %596 = vmatprep.subr.bf16.mxu0 0
          %597 = vmatpush2.bf16.msra.mxu0 0
          %598 = vmatprep.subr.bf16.mxu0 0
          %599 = vmatpush2.bf16.msra.mxu0 0
          %600 = vmatprep.subr.bf16.mxu0 0
          %601 = vmatpush2.bf16.msra.mxu0 0
          %602 = vmatprep.subr.bf16.mxu0 0
          %603 = vmatpush2.bf16.msra.mxu0 0
          %604 = vmatprep.subr.bf16.mxu0 0
          %605 = vmatpush2.bf16.msra.mxu0 0
          %606 = vmatprep.subr.bf16.mxu0 0
          %607 = vmatpush2.bf16.msra.mxu0 0
          %608 = vmatprep.subr.bf16.mxu0 0
          %609 = vmatpush2.bf16.msra.mxu0 0
          %610 = vmatprep.mubr.bf16.mxu0 0
          %611 = vmatmul.mubr.bf16.gmra.mxu0 %v416
          %v612 = vpop.f32.mrf.mxu0
          %v613 = vadd.f32 0.0, %v612
          %v614 = vpop.f32.mrf.mxu0
          %v615 = vadd.f32 0.0, %v614
          %v616 = vpop.f32.mrf.mxu0
          %v617 = vadd.f32 0.0, %v616
          %v618 = vpop.f32.mrf.mxu0
          %v619 = vadd.f32 0.0, %v618
          %620 = vdwg.mxu0
          %621 = vmatprep.subr.bf16.mxu0 %v545
          %622 = vmatpush1.bf16.msra.mxu0 %v544
          %623 = vmatprep.subr.bf16.mxu0 %v541
          %624 = vmatpush1.bf16.msra.mxu0 %v540
          %625 = vmatprep.subr.bf16.mxu0 %v537
          %626 = vmatpush1.bf16.msra.mxu0 %v536
          %627 = vmatprep.subr.bf16.mxu0 %v533
          %628 = vmatpush1.bf16.msra.mxu0 %v532
          %629 = vmatprep.subr.bf16.mxu0 %v529
          %630 = vmatpush1.bf16.msra.mxu0 %v528
          %631 = vmatprep.subr.bf16.mxu0 %v525
          %632 = vmatpush1.bf16.msra.mxu0 %v524
          %633 = vmatprep.subr.bf16.mxu0 %v521
          %634 = vmatpush1.bf16.msra.mxu0 %v520
          %635 = vmatprep.subr.bf16.mxu0 %v517
          %636 = vmatpush1.bf16.msra.mxu0 %v516
          %637 = vmatprep.subr.bf16.mxu0 0
          %638 = vmatpush2.bf16.msra.mxu0 0
          %639 = vmatprep.subr.bf16.mxu0 0
          %640 = vmatpush2.bf16.msra.mxu0 0
          %641 = vmatprep.subr.bf16.mxu0 0
          %642 = vmatpush2.bf16.msra.mxu0 0
          %643 = vmatprep.subr.bf16.mxu0 0
          %644 = vmatpush2.bf16.msra.mxu0 0
          %645 = vmatprep.subr.bf16.mxu0 0
          %646 = vmatpush2.bf16.msra.mxu0 0
          %647 = vmatprep.subr.bf16.mxu0 0
          %648 = vmatpush2.bf16.msra.mxu0 0
          %649 = vmatprep.subr.bf16.mxu0 0
          %650 = vmatpush2.bf16.msra.mxu0 0
          %651 = vmatprep.subr.bf16.mxu0 0
          %652 = vmatpush2.bf16.msra.mxu0 0
          %653 = vmatprep.mubr.bf16.mxu0 0
          %654 = vmatmul.mubr.bf16.gmra.mxu0 %v416
          %v655 = vpop.f32.mrf.mxu0
          %v656 = vadd.f32 0.0, %v655
          %v657 = vpop.f32.mrf.mxu0
          %v658 = vadd.f32 0.0, %v657
          %v659 = vpop.f32.mrf.mxu0
          %v660 = vadd.f32 0.0, %v659
          %v661 = vpop.f32.mrf.mxu0
          %v662 = vadd.f32 0.0, %v661
          %663 = vdwg.mxu0
          %v664 = vxor.u32 %v613, 2147483648
          %v665 = vxor.u32 %v615, 2147483648
          %v666 = vxor.u32 %v617, 2147483648
          %v667 = vxor.u32 %v619, 2147483648
          %v668 = vmul.f32 %v664, 1.442695
          %v669 = vpow.pop %v668
          %v670 = vmul.f32 %v665, 1.442695
          %v671 = vpow.pop %v670
          %v672 = vmul.f32 %v666, 1.442695
          %v673 = vpow.pop %v672
          %v674 = vmul.f32 %v667, 1.442695
          %v675 = vpow.pop %v674
          %v676 = vadd.f32 %v669, 1.0
          %v677 = vadd.f32 %v671, 1.0
          %v678 = vadd.f32 %v673, 1.0
          %v679 = vadd.f32 %v675, 1.0
          %v680 = vrcp.pop %v676
          %v681 = vmul.f32 1.0, %v680
          %v682 = vrcp.pop %v677
          %v683 = vmul.f32 1.0, %v682
          %v684 = vrcp.pop %v678
          %v685 = vmul.f32 1.0, %v684
          %v686 = vrcp.pop %v679
          %v687 = vmul.f32 1.0, %v686
          %v688 = vmul.f32 %v613, %v681
          %v689 = vmul.f32 %v615, %v683
          %v690 = vmul.f32 %v617, %v685
          %v691 = vmul.f32 %v619, %v687
          %v692 = vmul.f32 %v688, %v656
          %v693 = vmul.f32 %v689, %v658
          %v694 = vmul.f32 %v690, %v660
          %v695 = vmul.f32 %v691, %v662
          %v696 = vld [vmem:[%s360] sm:$0xff]
          %v697 = vld [vmem:[%s360 + $0x8] sm:$0xff]
          %699 = vset.pattern.permute.xlu0 0
          %700 = vperm.xlu0 %699, %v696
          %v701 = vpop.permute.xlu0 %700
          %704 = vset.pattern.permute.xlu0 0
          %705 = vperm.xlu0 %704, %v697
          %v706 = vpop.permute.xlu0 %705
          %v708 = vmul.f32 %v692, %v701
          %v709 = vmul.f32 %v693, %v701
          %v710 = vmul.f32 %v694, %v706
          %v711 = vmul.f32 %v695, %v706
          %v712 = vld [vmem:[#allocation10] sm:$0xff]
          %v713 = vld [vmem:[#allocation10 + $0x8] sm:$0xff]
          %v714 = vpack.c.bf16 %v710, %v708
          %v715 = vpack.c.bf16 %v711, %v709
          %v716 = vld [vmem:[%s301] sm:$0xf]
          %v717 = vld [vmem:[%s301 + $0x4] sm:$0xf]
          %v718 = vld [vmem:[%s301 + $0x8] sm:$0xf]
          %v719 = vld [vmem:[%s301 + $0xc] sm:$0xf]
          %v720 = vld [vmem:[%s301 + $0x10] sm:$0xf]
          %v721 = vld [vmem:[%s301 + $0x14] sm:$0xf]
          %v722 = vld [vmem:[%s301 + $0x18] sm:$0xf]
          %v723 = vld [vmem:[%s301 + $0x1c] sm:$0xf]
          %v724 = vld [vmem:[%s301 + $0x20] sm:$0xf]
          %v725 = vld [vmem:[%s301 + $0x24] sm:$0xf]
          %v726 = vld [vmem:[%s301 + $0x28] sm:$0xf]
          %v727 = vld [vmem:[%s301 + $0x2c] sm:$0xf]
          %v728 = vld [vmem:[%s301 + $0x30] sm:$0xf]
          %v729 = vld [vmem:[%s301 + $0x34] sm:$0xf]
          %v730 = vld [vmem:[%s301 + $0x38] sm:$0xf]
          %v731 = vld [vmem:[%s301 + $0x3c] sm:$0xf]
          %v732 = vld [vmem:[%s301 + $0x40] sm:$0xf]
          %v733 = vld [vmem:[%s301 + $0x44] sm:$0xf]
          %v734 = vld [vmem:[%s301 + $0x48] sm:$0xf]
          %v735 = vld [vmem:[%s301 + $0x4c] sm:$0xf]
          %v736 = vld [vmem:[%s301 + $0x50] sm:$0xf]
          %v737 = vld [vmem:[%s301 + $0x54] sm:$0xf]
          %v738 = vld [vmem:[%s301 + $0x58] sm:$0xf]
          %v739 = vld [vmem:[%s301 + $0x5c] sm:$0xf]
          %v740 = vld [vmem:[%s301 + $0x60] sm:$0xf]
          %v741 = vld [vmem:[%s301 + $0x64] sm:$0xf]
          %v742 = vld [vmem:[%s301 + $0x68] sm:$0xf]
          %v743 = vld [vmem:[%s301 + $0x6c] sm:$0xf]
          %v744 = vld [vmem:[%s301 + $0x70] sm:$0xf]
          %v745 = vld [vmem:[%s301 + $0x74] sm:$0xf]
          %v746 = vld [vmem:[%s301 + $0x78] sm:$0xf]
          %v747 = vld [vmem:[%s301 + $0x7c] sm:$0xf]
          %v780 = vunpack.c.l.b16 %v716
          %v781 = vunpack.c.l.b16 %v717
          %v782 = vunpack.c.l.b16 %v718
          %v783 = vunpack.c.l.b16 %v719
          %v784 = vunpack.c.l.b16 %v720
          %v785 = vunpack.c.l.b16 %v721
          %v786 = vunpack.c.l.b16 %v722
          %v787 = vunpack.c.l.b16 %v723
          %v788 = vunpack.c.l.b16 %v724
          %v789 = vunpack.c.l.b16 %v725
          %v790 = vunpack.c.l.b16 %v726
          %v791 = vunpack.c.l.b16 %v727
          %v792 = vunpack.c.l.b16 %v728
          %v793 = vunpack.c.l.b16 %v729
          %v794 = vunpack.c.l.b16 %v730
          %v795 = vunpack.c.l.b16 %v731
          %v796 = vunpack.c.l.b16 %v732
          %v797 = vunpack.c.l.b16 %v733
          %v798 = vunpack.c.l.b16 %v734
          %v799 = vunpack.c.l.b16 %v735
          %v800 = vunpack.c.l.b16 %v736
          %v801 = vunpack.c.l.b16 %v737
          %v802 = vunpack.c.l.b16 %v738
          %v803 = vunpack.c.l.b16 %v739
          %v804 = vunpack.c.l.b16 %v740
          %v805 = vunpack.c.l.b16 %v741
          %v806 = vunpack.c.l.b16 %v742
          %v807 = vunpack.c.l.b16 %v743
          %v808 = vunpack.c.l.b16 %v744
          %v809 = vunpack.c.l.b16 %v745
          %v810 = vunpack.c.l.b16 %v746
          %v811 = vunpack.c.l.b16 %v747
          %v812 = vpack.c.b16 %v781, %v780
          %v813 = vpack.c.b16 %v783, %v782
          %v814 = vpack.c.b16 %v785, %v784
          %v815 = vpack.c.b16 %v787, %v786
          %v816 = vpack.c.b16 %v789, %v788
          %v817 = vpack.c.b16 %v791, %v790
          %v818 = vpack.c.b16 %v793, %v792
          %v819 = vpack.c.b16 %v795, %v794
          %v820 = vpack.c.b16 %v797, %v796
          %v821 = vpack.c.b16 %v799, %v798
          %v822 = vpack.c.b16 %v801, %v800
          %v823 = vpack.c.b16 %v803, %v802
          %v824 = vpack.c.b16 %v805, %v804
          %v825 = vpack.c.b16 %v807, %v806
          %v826 = vpack.c.b16 %v809, %v808
          %v827 = vpack.c.b16 %v811, %v810
          %844 = vmatprep.subr.bf16.mxu0 0
          %845 = vmatpush1.bf16.msra.mxu0 %v819
          %846 = vmatprep.subr.bf16.mxu0 0
          %847 = vmatpush1.bf16.msra.mxu0 %v818
          %848 = vmatprep.subr.bf16.mxu0 0
          %849 = vmatpush1.bf16.msra.mxu0 %v817
          %850 = vmatprep.subr.bf16.mxu0 0
          %851 = vmatpush1.bf16.msra.mxu0 %v816
          %852 = vmatprep.subr.bf16.mxu0 0
          %853 = vmatpush1.bf16.msra.mxu0 %v815
          %854 = vmatprep.subr.bf16.mxu0 0
          %855 = vmatpush1.bf16.msra.mxu0 %v814
          %856 = vmatprep.subr.bf16.mxu0 0
          %857 = vmatpush1.bf16.msra.mxu0 %v813
          %858 = vmatprep.subr.bf16.mxu0 0
          %859 = vmatpush1.bf16.msra.mxu0 %v812
          %860 = vmatprep.subr.bf16.mxu0 0
          %861 = vmatpush2.bf16.msra.mxu0 %v827
          %862 = vmatprep.subr.bf16.mxu0 0
          %863 = vmatpush2.bf16.msra.mxu0 %v826
          %864 = vmatprep.subr.bf16.mxu0 0
          %865 = vmatpush2.bf16.msra.mxu0 %v825
          %866 = vmatprep.subr.bf16.mxu0 0
          %867 = vmatpush2.bf16.msra.mxu0 %v824
          %868 = vmatprep.subr.bf16.mxu0 0
          %869 = vmatpush2.bf16.msra.mxu0 %v823
          %870 = vmatprep.subr.bf16.mxu0 0
          %871 = vmatpush2.bf16.msra.mxu0 %v822
          %872 = vmatprep.subr.bf16.mxu0 0
          %873 = vmatpush2.bf16.msra.mxu0 %v821
          %874 = vmatprep.subr.bf16.mxu0 0
          %875 = vmatpush2.bf16.msra.mxu0 %v820
          %876 = vmatprep.mubr.bf16.mxu0 %v715
          %877 = vmatmul.mubr.bf16.gmra.mxu0 %v714
          %v878 = vpop.f32.mrf.mxu0
          %v879 = vadd.f32 0.0, %v878
          %v880 = vpop.f32.mrf.mxu0
          %v881 = vpop.f32.mrf.mxu0
          %v882 = vadd.f32 0.0, %v881
          %v883 = vpop.f32.mrf.mxu0
          %884 = vdwg.mxu0
          %v885 = vadd.f32 %v712, %v879
          %v886 = vadd.f32 %v713, %v882
          %887 = vst [vmem:[#allocation10] sm:$0xff] %v885
          %888 = vst [vmem:[#allocation10 + $0x8] sm:$0xff] %v886
        $region52: #{gated_mlp_fused_moe.1} parent=35 // pred_fallthru
          _
        // Predicated region
        $region53: #{gated_mlp_fused_moe.1} parent=35 // pred_check
          %p889 = pneg %p187
        $region54: #{gated_mlp_fused_moe.1} parent=35 // pred_check_branch
          %891 = sbr.rel (%p889) target = $region56
        $region55: #{gated_mlp_fused_moe.1} parent=35 // pred_region
          %s892 = smul.u32 2, %s39
          %s894 = ssub.s32 256, 256
          %895 = vsyncadd [#allocation7], %s894
          %s896 = smul.addr %s892, 128
          %s897 = scalar_lea.hbm %s6, %s896
          %s898 = sshll.u32 [#allocation10], 4
          %s899 = int_to_ptr.vmem [resolvable:$true] %s898
          %904 = dma.vmem_to_hbm [thread:$0]  %s899, 256, %s897, [#allocation7], 128, 128, 8
        $region56: #{gated_mlp_fused_moe.1} parent=35 // pred_fallthru
          _
        // Predicated region
        $region57: #{gated_mlp_fused_moe.1} parent=35 // pred_check
          %p905 = pneg %p187
        $region58: #{gated_mlp_fused_moe.1} parent=35 // pred_check_branch
          %907 = sbr.rel (%p905) target = $region60
        $region59: #{gated_mlp_fused_moe.1} parent=35 // pred_region
          %908 = dma.done [#allocation7], 256
        $region60: #{gated_mlp_fused_moe.1} parent=35 // pred_fallthru
          _
      $region36: #{gated_mlp_fused_moe.1} parent=5 // pred_fallthru
        _
      %p909 = scmp.le.s32.totalorder 2, %s29
      // Predicated region
      $region61: #{gated_mlp_fused_moe.1} parent=5 // pred_check
        %p910 = pneg %p909
      $region62: #{gated_mlp_fused_moe.1} parent=5 // pred_check_branch
        %912 = sbr.rel (%p910) target = $region64
      $region63: #{gated_mlp_fused_moe.1} parent=5 // pred_region
        %s913 = ssub.s32 %s29, 2
      $region64: #{gated_mlp_fused_moe.1} parent=5 // pred_fallthru
        _
    $region6: #{gated_mlp_fused_moe.1} parent=1 // loop_footer
      %s33 = sadd.s32 1, %s29
    $region7: #{gated_mlp_fused_moe.1} parent=1 // loop_footer_branch
      %28 = sbr.rel target = $region3
    $region8: #{gated_mlp_fused_moe.1} parent=1 // loop_exit
      _
    %914 = vsyncpa [#allocation6], 1
    %s915 = scalar_lea.sflag [#allocation6], 1
    %916 = vsyncpa %s915, 1
    %917 = vsyncpa [#allocation9], 1
    %s918 = scalar_lea.sflag [#allocation9], 1
    %919 = vsyncpa %s918, 1
    %920 = vsyncpa [#allocation7], 1
    %s921 = scalar_lea.sflag [#allocation7], 1
    %922 = vsyncpa %s921, 1

</llo_original>
